<compile_context>
chip_gen: v7x
topology: tpu7x:2x2x1
jax: 0.10.0
libtpu: 0.0.40
codegen_flags: <defaults>
</compile_context>

<pallas_src>
import functools

import jax
import jax.numpy as jnp
from jax import lax
from jax.experimental import pallas as pl
from jax.experimental.pallas import tpu as pltpu

_LANES = 128
_SUBLANES = 8


def _round_up(x, m):
    return ((x + m - 1) // m) * m


def _dice_partial_kernel(yp_ref, yt_ref, inter_ref, union_ref, *,
                         rows, block_rows, needs_mask):
    """Grid = (partials, row-tiles); axis 1 is the reduction axis."""
    i = pl.program_id(0)   # partial index ("parallel"; one per TC on v7x)
    j = pl.program_id(1)   # row-tile index within this partial ("arbitrary")

    @pl.when(j == 0)
    def _init():
        inter_ref[...] = jnp.zeros_like(inter_ref)
        union_ref[...] = jnp.zeros_like(union_ref)

    yp = yp_ref[...].astype(jnp.float32)
    yt = yt_ref[...].astype(jnp.float32)

    if needs_mask:
        # Zero rows past the end of the flattened input: the tail tile is
        # partial (DMA leaves stale rows in VMEM) and overshoot tiles (when
        # tiles don't split evenly across partials) re-read the last tile and
        # must contribute nothing.
        t = i * pl.num_programs(1) + j            # global row-tile index
        valid_rows = rows - t * block_rows        # may be <= 0 or > block_rows
        row_ids = lax.broadcasted_iota(jnp.int32, (block_rows, _LANES), 0)
        keep = row_ids < valid_rows
        yp = jnp.where(keep, yp, 0.0)
        yt = jnp.where(keep, yt, 0.0)

    groups = block_rows // _SUBLANES
    # Reduce only along the leading vreg-group axis -> pure VPU adds; the
    # cross-lane/cross-sublane reduction is deferred to the wrapper (once).
    inter_ref[0] += jnp.sum((yt * yp).reshape(groups, _SUBLANES, _LANES), axis=0)
    union_ref[0] += jnp.sum((yt + yp).reshape(groups, _SUBLANES, _LANES), axis=0)


def dice(y_pred, y_true, smooth=1.0, *, block_rows=2048, num_partials=2):
    """Returns (dice_loss, dice_score) as float32 scalars."""
    assert y_pred.shape == y_true.shape, "y_pred and y_true must match in shape"

    yp_f = jnp.ravel(y_pred)
    yt_f = jnp.ravel(y_true)
    n = yp_f.shape[0]

    # Minimal ragged-lane pad (< 128 zeros) only when numel % 128 != 0; zeros
    # are neutral for both reductions. No whole-array copy in the common case.
    rows = -(-n // _LANES)
    n_lanes = rows * _LANES
    if n_lanes != n:
        yp_f = jnp.pad(yp_f, (0, n_lanes - n))
        yt_f = jnp.pad(yt_f, (0, n_lanes - n))
    yp2 = yp_f.reshape(rows, _LANES)
    yt2 = yt_f.reshape(rows, _LANES)

    # Tile sizing: big lane-dense row tiles, clamped for small inputs.
    block_rows = max(_SUBLANES, min(block_rows, _round_up(rows, _SUBLANES)))
    block_rows = _round_up(block_rows, _SUBLANES)

    total_tiles = -(-rows // block_rows)
    num_partials = max(1, min(num_partials, total_tiles))
    nsteps = -(-total_tiles // num_partials)
    needs_mask = (num_partials * nsteps * block_rows) != rows

    last_tile = total_tiles - 1

    def in_map(i, j):
        # Clamp so overshoot steps re-read the last tile (their contribution is
        # masked to zero inside the kernel).
        return (jnp.minimum(i * nsteps + j, last_tile), 0)

    kernel = functools.partial(
        _dice_partial_kernel,
        rows=rows, block_rows=block_rows, needs_mask=needs_mask)

    bytes_in = n * (jnp.dtype(y_pred.dtype).itemsize +
                    jnp.dtype(y_true.dtype).itemsize)
    cost = pl.CostEstimate(flops=4 * n, transcendentals=0,
                           bytes_accessed=bytes_in)

    out_block = pl.BlockSpec((1, _SUBLANES, _LANES), lambda i, j: (i, 0, 0))

    inter_p, union_p = pl.pallas_call(
        kernel,
        out_shape=(
            jax.ShapeDtypeStruct((num_partials, _SUBLANES, _LANES), jnp.float32),
            jax.ShapeDtypeStruct((num_partials, _SUBLANES, _LANES), jnp.float32),
        ),
        grid_spec=pltpu.PrefetchScalarGridSpec(
            num_scalar_prefetch=0,
            grid=(num_partials, nsteps),
            in_specs=[
                pl.BlockSpec((block_rows, _LANES), in_map),
                pl.BlockSpec((block_rows, _LANES), in_map),
            ],
            out_specs=(out_block, out_block),
        ),
        compiler_params=pltpu.CompilerParams(
            dimension_semantics=("parallel", "arbitrary")),
        cost_estimate=cost,
    )(yp2, yt2)

    # Tiny epilogue: final cross-lane reduce of the (P,8,128) partials + formula.
    intersection = jnp.sum(inter_p)
    union = jnp.sum(union_p)
    smooth = jnp.float32(smooth)
    score = (2.0 * intersection + smooth) / (union + smooth)
    loss = 1.0 - score
    return loss, score


def _reference(y_pred, y_true, smooth=1.0):
    yp = jnp.ravel(y_pred).astype(jnp.float32)
    yt = jnp.ravel(y_true).astype(jnp.float32)
    inter = jnp.sum(yt * yp)
    union = jnp.sum(yt + yp)
    score = (2.0 * inter + smooth) / (union + smooth)
    return 1.0 - score, score


if __name__ == "__main__":
    key = jax.random.PRNGKey(0)
    k1, k2, k3 = jax.random.split(key, 3)

    def make_inputs(k, shape):
        ka, kb = jax.random.split(k)
        y_pred = jax.nn.sigmoid(jax.random.normal(ka, shape, dtype=jnp.float32))
        y_true = (jax.random.uniform(kb, shape) > 0.5).astype(jnp.float32)
        return y_pred, y_true

    # Case 1: NCHW like the PyTorch module would see; single-tile fast path.
    yp, yt = make_inputs(k1, (2, 4, 16, 16))
    loss, score = dice(yp, yt, smooth=1.0)
    jax.block_until_ready((loss, score))
    ref_loss, ref_score = _reference(yp, yt, 1.0)
    assert jnp.allclose(score, ref_score, rtol=1e-5, atol=1e-5)
    assert jnp.allclose(loss, ref_loss, rtol=1e-5, atol=1e-5)

    # Case 2: multi-tile grid with 2 partials + partial tail tile (exercises the
    # in-kernel row mask and the clamped index map).
    yp, yt = make_inputs(k2, (2, 4, 48, 20))
    loss, score = dice(yp, yt, smooth=1.0, block_rows=8, num_partials=2)
    jax.block_until_ready((loss, score))
    ref_loss, ref_score = _reference(yp, yt, 1.0)
    assert jnp.allclose(score, ref_score, rtol=1e-5, atol=1e-5)
    assert jnp.allclose(loss, ref_loss, rtol=1e-5, atol=1e-5)

    # Case 3: numel not a multiple of 128 (minimal ragged-lane pad path).
    yp, yt = make_inputs(k3, (3, 5, 7, 11))
    loss, score = dice(yp, yt, smooth=1.0)
    jax.block_until_ready((loss, score))
    ref_loss, ref_score = _reference(yp, yt, 1.0)
    assert jnp.allclose(score, ref_score, rtol=1e-5, atol=1e-5)
    assert jnp.allclose(loss, ref_loss, rtol=1e-5, atol=1e-5)

    print("KERNEL_OK")
</pallas_src>

<mosaic_0001>
module attributes {stable_mosaic.version = 11 : i64} {
  func.func @_dice_partial_kernel(%arg0: i32, %arg1: i32, %arg2: memref<16x128xf32, #tpu.memory_space<vmem>>, %arg3: memref<16x128xf32, #tpu.memory_space<vmem>>, %arg4: memref<1x8x128xf32, #tpu.memory_space<vmem>>, %arg5: memref<1x8x128xf32, #tpu.memory_space<vmem>>) attributes {dimension_semantics = [#tpu.dimension_semantics<parallel>, #tpu.dimension_semantics<arbitrary>], iteration_bounds = array<i64: 1, 1>, scalar_prefetch = 0 : i64, scratch_operands = 0 : i64, tpu.core_type = #tpu.core_type<tc>, window_params = [{transform_indices = @transform_0, window_bounds = array<i64: 16, 128>}, {transform_indices = @transform_1, window_bounds = array<i64: 16, 128>}, {transform_indices = @transform_2, window_bounds = array<i64: 1, 8, 128>}, {transform_indices = @transform_3, window_bounds = array<i64: 1, 8, 128>}]} {
    %c0_i32 = arith.constant 0 : i32
    %0 = arith.cmpi eq, %arg1, %c0_i32 : i32
    %1 = arith.extui %0 : i1 to i32
    %c0_i32_0 = arith.constant 0 : i32
    %2 = arith.cmpi ne, %1, %c0_i32_0 : i32
    scf.if %2 {
      %cst_17 = arith.constant 0.000000e+00 : f32
      %23 = vector.broadcast %cst_17 : f32 to vector<1x8x128xf32>
      %c0_18 = arith.constant 0 : index
      %c0_19 = arith.constant 0 : index
      %c0_20 = arith.constant 0 : index
      %24 = vector.load %arg4[%c0_18, %c0_19, %c0_20] : memref<1x8x128xf32, #tpu.memory_space<vmem>>, vector<1x8x128xf32>
      tpu.vector_store %arg4[%c0_18, %c0_19, %c0_20], %23 {strides = array<i32>} : memref<1x8x128xf32, #tpu.memory_space<vmem>>, vector<1x8x128xf32>,
      %cst_21 = arith.constant 0.000000e+00 : f32
      %25 = vector.broadcast %cst_21 : f32 to vector<1x8x128xf32>
      %c0_22 = arith.constant 0 : index
      %c0_23 = arith.constant 0 : index
      %c0_24 = arith.constant 0 : index
      %26 = vector.load %arg5[%c0_22, %c0_23, %c0_24] : memref<1x8x128xf32, #tpu.memory_space<vmem>>, vector<1x8x128xf32>
      tpu.vector_store %arg5[%c0_22, %c0_23, %c0_24], %25 {strides = array<i32>} : memref<1x8x128xf32, #tpu.memory_space<vmem>>, vector<1x8x128xf32>,
    } else {
    }
    %c0 = arith.constant 0 : index
    %c0_1 = arith.constant 0 : index
    %3 = vector.load %arg2[%c0, %c0_1] : memref<16x128xf32, #tpu.memory_space<vmem>>, vector<16x128xf32>
    %c0_2 = arith.constant 0 : index
    %c0_3 = arith.constant 0 : index
    %4 = vector.load %arg3[%c0_2, %c0_3] : memref<16x128xf32, #tpu.memory_space<vmem>>, vector<16x128xf32>
    %c0_4 = arith.constant 0 : index
    %c0_5 = arith.constant 0 : index
    %c0_6 = arith.constant 0 : index
    %5 = vector.load %arg4[%c0_4, %c0_5, %c0_6] : memref<1x8x128xf32, #tpu.memory_space<vmem>>, vector<1x8x128xf32>
    %6 = vector.shape_cast %5 : vector<1x8x128xf32> to vector<8x128xf32>
    %7 = arith.mulf %4, %3 : vector<16x128xf32>
    %8 = vector.shape_cast %7 : vector<16x128xf32> to vector<2x8x128xf32>
    %cst = arith.constant dense<0.000000e+00> : vector<8x128xf32>
    %9 = vector.multi_reduction <add>, %8, %cst [0] : vector<2x8x128xf32> to vector<8x128xf32>
    %10 = arith.addf %6, %9 : vector<8x128xf32>
    %c0_7 = arith.constant 0 : index
    %c0_8 = arith.constant 0 : index
    %c0_9 = arith.constant 0 : index
    %11 = vector.load %arg4[%c0_7, %c0_8, %c0_9] : memref<1x8x128xf32, #tpu.memory_space<vmem>>, vector<1x8x128xf32>
    %12 = vector.shape_cast %11 : vector<1x8x128xf32> to vector<8x128xf32>
    %13 = vector.shape_cast %10 : vector<8x128xf32> to vector<1x8x128xf32>
    tpu.vector_store %arg4[%c0_7, %c0_8, %c0_9], %13 {strides = array<i32>} : memref<1x8x128xf32, #tpu.memory_space<vmem>>, vector<1x8x128xf32>,
    %c0_10 = arith.constant 0 : index
    %c0_11 = arith.constant 0 : index
    %c0_12 = arith.constant 0 : index
    %14 = vector.load %arg5[%c0_10, %c0_11, %c0_12] : memref<1x8x128xf32, #tpu.memory_space<vmem>>, vector<1x8x128xf32>
    %15 = vector.shape_cast %14 : vector<1x8x128xf32> to vector<8x128xf32>
    %16 = arith.addf %4, %3 : vector<16x128xf32>
    %17 = vector.shape_cast %16 : vector<16x128xf32> to vector<2x8x128xf32>
    %cst_13 = arith.constant dense<0.000000e+00> : vector<8x128xf32>
    %18 = vector.multi_reduction <add>, %17, %cst_13 [0] : vector<2x8x128xf32> to vector<8x128xf32>
    %19 = arith.addf %15, %18 : vector<8x128xf32>
    %c0_14 = arith.constant 0 : index
    %c0_15 = arith.constant 0 : index
    %c0_16 = arith.constant 0 : index
    %20 = vector.load %arg5[%c0_14, %c0_15, %c0_16] : memref<1x8x128xf32, #tpu.memory_space<vmem>>, vector<1x8x128xf32>
    %21 = vector.shape_cast %20 : vector<1x8x128xf32> to vector<8x128xf32>
    %22 = vector.shape_cast %19 : vector<8x128xf32> to vector<1x8x128xf32>
    tpu.vector_store %arg5[%c0_14, %c0_15, %c0_16], %22 {strides = array<i32>} : memref<1x8x128xf32, #tpu.memory_space<vmem>>, vector<1x8x128xf32>,
    return
  }
  func.func @transform_0(%arg0: i32, %arg1: i32) -> (i32, i32) {
    %c1_i32 = arith.constant 1 : i32
    %0 = arith.muli %arg0, %c1_i32 : i32
    %1 = arith.addi %0, %arg1 : i32
    %c0_i32 = arith.constant 0 : i32
    %2 = arith.minsi %1, %c0_i32 : i32
    %c0_i32_0 = arith.constant 0 : i32
    %c0_i32_1 = arith.constant 0 : i32
    return %2, %c0_i32_0 : i32, i32
  }
  func.func @transform_1(%arg0: i32, %arg1: i32) -> (i32, i32) {
    %c1_i32 = arith.constant 1 : i32
    %0 = arith.muli %arg0, %c1_i32 : i32
    %1 = arith.addi %0, %arg1 : i32
    %c0_i32 = arith.constant 0 : i32
    %2 = arith.minsi %1, %c0_i32 : i32
    %c0_i32_0 = arith.constant 0 : i32
    %c0_i32_1 = arith.constant 0 : i32
    return %2, %c0_i32_0 : i32, i32
  }
  func.func @transform_2(%arg0: i32, %arg1: i32) -> (i32, i32, i32) {
    %c0_i32 = arith.constant 0 : i32
    %c0_i32_0 = arith.constant 0 : i32
    %c0_i32_1 = arith.constant 0 : i32
    return %arg0, %c0_i32, %c0_i32_0 : i32, i32, i32
  }
  func.func @transform_3(%arg0: i32, %arg1: i32) -> (i32, i32, i32) {
    %c0_i32 = arith.constant 0 : i32
    %c0_i32_0 = arith.constant 0 : i32
    %c0_i32_1 = arith.constant 0 : i32
    return %arg0, %c0_i32, %c0_i32_0 : i32, i32, i32
  }
}

</mosaic_0001>

<llo_original>
// kernel: tpu_custom_call.1
$region0: #{tpu_custom_call.1}
  #allocation0 [shape = 'u32[]', space=smem, size = 0x4, offset = 0x4, fixed_abs, tag = 'smem constant byte address 0x4 - core index']
  #allocation1 [shape = 'u32[144,128]{1,0:T(1,128)}', space=vmem, size = 0x12000, scoped, tag = 'internal scratch']
  %s0 = inlined_call_operand.hbm [shape: f32[16,128], index: 0, kind: input, shape index: {}]
  %s1 = inlined_call_operand.hbm [shape: f32[16,128], index: 1, kind: input, shape index: {}]
  %s2 = inlined_call_operand.hbm [shape: f32[1,8,128], index: 2, kind: output, shape index: {0}]
  %s3 = inlined_call_operand.hbm [shape: f32[1,8,128], index: 3, kind: output, shape index: {1}]
  %4 = xla_tuple %s2, %s3
  %s5 = sld [smem:[#allocation0]]
  $region38: #{tpu_custom_call.1} parent=0
    _
  %s7 = ssub.s32 1, %s5
  %s8 = scalar_select 0, %s7, %s5
  $region1: #{tpu_custom_call.1} parent=0
    #allocation2 [shape = 'u8[8192]{0}', space=vmem, size = 0x2000, scoped, tag = 'input window, operand 0, single buffered']
    #allocation3 [shape = 's32[1]{0}', space=sflag, size = 0x4, scoped, tag = 'scoped memory for tpu_custom_call.1']
    #allocation4 [shape = 's32[1]{0}', space=sflag, size = 0x4, scoped, tag = 'scoped memory for tpu_custom_call.1']
    #allocation5 [shape = 'u8[8192]{0}', space=vmem, size = 0x2000, scoped, tag = 'input window, operand 1, single buffered']
    #allocation6 [shape = 's32[1]{0}', space=sflag, size = 0x4, scoped, tag = 'scoped memory for tpu_custom_call.1']
    #allocation7 [shape = 'u8[4096]{0}', space=vmem, size = 0x1000, scoped, tag = 'output window, operand 0, single buffered']
    #allocation8 [shape = 'u8[4096]{0}', space=vmem, size = 0x1000, scoped, tag = 'output window, operand 1, single buffered']
    #allocation9 [shape = 's32[1]{0}', space=sflag, size = 0x4, scoped, tag = 'scoped memory for tpu_custom_call.1']
    %9 = vsyncpa [#allocation3], 0
    %10 = vsyncpa [#allocation6], 0
    %11 = vsyncpa [#allocation4], 0
    %12 = vsyncpa [#allocation9], 0
    // Predicated region
    $region2: #{tpu_custom_call.1} parent=1 // pred_check
      _
    $region3: #{tpu_custom_call.1} parent=1 // pred_check_branch
      %14 = sbr.rel (0) target = $region5
    $region4: #{tpu_custom_call.1} parent=1 // pred_region
      %s15 = sadd.s32 0, 0
      %p16 = scmp.lt.s32.totalorder %s15, 0
      %s17 = scalar_select %p16, %s15, 0
      %s18 = smul.u32 2, %s17
      %s20 = ssub.s32 256, 256
      %21 = vsyncadd [#allocation3], %s20
      %s22 = smul.addr %s18, 128
      %s23 = scalar_lea.hbm %s0, %s22
      %s24 = sshll.u32 [#allocation2], 4
      %s25 = int_to_ptr.vmem [resolvable:$true] %s24
      %30 = dma.hbm_to_vmem [thread:$0]  %s23, 256, %s25, [#allocation3], 128, 128, 8
    $region5: #{tpu_custom_call.1} parent=1 // pred_fallthru
      _
    // Predicated region
    $region6: #{tpu_custom_call.1} parent=1 // pred_check
      _
    $region7: #{tpu_custom_call.1} parent=1 // pred_check_branch
      %32 = sbr.rel (0) target = $region9
    $region8: #{tpu_custom_call.1} parent=1 // pred_region
      %s33 = sadd.s32 0, 0
      %p34 = scmp.lt.s32.totalorder %s33, 0
      %s35 = scalar_select %p34, %s33, 0
      %s36 = smul.u32 2, %s35
      %s38 = ssub.s32 256, 256
      %39 = vsyncadd [#allocation6], %s38
      %s40 = smul.addr %s36, 128
      %s41 = scalar_lea.hbm %s1, %s40
      %s42 = sshll.u32 [#allocation5], 4
      %s43 = int_to_ptr.vmem [resolvable:$true] %s42
      %48 = dma.hbm_to_vmem [thread:$0]  %s41, 256, %s43, [#allocation6], 128, 128, 8
    $region9: #{tpu_custom_call.1} parent=1 // pred_fallthru
      _
    // Predicated region
    $region10: #{tpu_custom_call.1} parent=1 // pred_check
      _
    $region11: #{tpu_custom_call.1} parent=1 // pred_check_branch
      %50 = sbr.rel (0) target = $region13
    $region12: #{tpu_custom_call.1} parent=1 // pred_region
      %51 = dma.done [#allocation3], 256
    $region13: #{tpu_custom_call.1} parent=1 // pred_fallthru
      _
    // Predicated region
    $region14: #{tpu_custom_call.1} parent=1 // pred_check
      _
    $region15: #{tpu_custom_call.1} parent=1 // pred_check_branch
      %53 = sbr.rel (0) target = $region17
    $region16: #{tpu_custom_call.1} parent=1 // pred_region
      %54 = dma.done [#allocation6], 256
    $region17: #{tpu_custom_call.1} parent=1 // pred_fallthru
      _
    %s55 = sadd.s32 0, 0
    %p56 = scmp.lt.s32.totalorder %s55, 0
    %s57 = scalar_select %p56, %s55, 0
    %s58 = smul.u32 2, %s57
    %s59 = sadd.s32 0, 0
    %p60 = scmp.lt.s32.totalorder %s59, 0
    %s61 = scalar_select %p60, %s59, 0
    %s62 = smul.u32 2, %s61
    %p63 = scmp.eq.s32.totalorder 0, 0
    // Predicated region
    $region18: #{tpu_custom_call.1} parent=1 // pred_check
      %p64 = pneg %p63
    $region19: #{tpu_custom_call.1} parent=1 // pred_check_branch
      %66 = sbr.rel (%p64) target = $region21
    $region20: #{tpu_custom_call.1} parent=1 // pred_region
      %67 = vst [vmem:[#allocation7] sm:$0xff] 0.0
      %68 = vst [vmem:[#allocation8] sm:$0xff] 0.0
    $region21: #{tpu_custom_call.1} parent=1 // pred_fallthru
      _
    %v69 = vld [vmem:[#allocation2] sm:$0xff]
    %v70 = vld [vmem:[#allocation2 + $0x8] sm:$0xff]
    %v71 = vld [vmem:[#allocation5] sm:$0xff]
    %v72 = vld [vmem:[#allocation5 + $0x8] sm:$0xff]
    %v73 = vld [vmem:[#allocation7] sm:$0xff]
    %v74 = vmul.f32 %v71, %v69
    %v75 = vmul.f32 %v72, %v70
    %v76 = vadd.f32 %v74, %v75
    %v77 = vadd.f32 %v73, %v76
    %78 = vst [vmem:[#allocation7] sm:$0xff] %v77
    %v79 = vld [vmem:[#allocation8] sm:$0xff]
    %v80 = vadd.f32 %v71, %v69
    %v81 = vadd.f32 %v72, %v70
    %v82 = vadd.f32 %v80, %v81
    %v83 = vadd.f32 %v79, %v82
    %84 = vst [vmem:[#allocation8] sm:$0xff] %v83
    // Predicated region
    $region22: #{tpu_custom_call.1} parent=1 // pred_check
      _
    $region23: #{tpu_custom_call.1} parent=1 // pred_check_branch
      %86 = sbr.rel (0) target = $region25
    $region24: #{tpu_custom_call.1} parent=1 // pred_region
      %s88 = ssub.s32 128, 128
      %89 = vsyncadd [#allocation4], %s88
      %s91 = sshll.u32 [#allocation7], 4
      %s92 = int_to_ptr.vmem [resolvable:$true] %s91
      %94 = dma.vmem_to_hbm [thread:$0]  %s92, 128, %s2, [#allocation4]
    $region25: #{tpu_custom_call.1} parent=1 // pred_fallthru
      _
    // Predicated region
    $region26: #{tpu_custom_call.1} parent=1 // pred_check
      _
    $region27: #{tpu_custom_call.1} parent=1 // pred_check_branch
      %96 = sbr.rel (0) target = $region29
    $region28: #{tpu_custom_call.1} parent=1 // pred_region
      %s98 = ssub.s32 128, 128
      %99 = vsyncadd [#allocation9], %s98
      %s101 = sshll.u32 [#allocation8], 4
      %s102 = int_to_ptr.vmem [resolvable:$true] %s101
      %104 = dma.vmem_to_hbm [thread:$0]  %s102, 128, %s3, [#allocation9]
    $region29: #{tpu_custom_call.1} parent=1 // pred_fallthru
      _
    // Predicated region
    $region30: #{tpu_custom_call.1} parent=1 // pred_check
      _
    $region31: #{tpu_custom_call.1} parent=1 // pred_check_branch
      %106 = sbr.rel (0) target = $region33
    $region32: #{tpu_custom_call.1} parent=1 // pred_region
      %107 = dma.done [#allocation4], 128
    $region33: #{tpu_custom_call.1} parent=1 // pred_fallthru
      _
    // Predicated region
    $region34: #{tpu_custom_call.1} parent=1 // pred_check
      _
    $region35: #{tpu_custom_call.1} parent=1 // pred_check_branch
      %109 = sbr.rel (0) target = $region37
    $region36: #{tpu_custom_call.1} parent=1 // pred_region
      %110 = dma.done [#allocation9], 128
    $region37: #{tpu_custom_call.1} parent=1 // pred_fallthru
      _
    %111 = vsyncpa [#allocation3], 1
    %112 = vsyncpa [#allocation6], 1
    %113 = vsyncpa [#allocation4], 1
    %114 = vsyncpa [#allocation9], 1

</llo_original>
